<compile_context>
chip_gen: v7x
topology: tpu7x:2x2x1
jax: 0.10.0
libtpu: 0.0.40
codegen_flags: <defaults>
</compile_context>

<pallas_src>
import numpy as np
import jax
import jax.numpy as jnp
from jax.experimental import pallas as pl
from jax.experimental.pallas import tpu as pltpu

EPS = float(np.finfo(np.float32).eps)        # same eps as the PyTorch module
LOG_2PI = float(np.log(2.0 * np.pi))


def _round_up(x, m):
    return (x + m - 1) // m * m


def _vmem_budget_bytes():
    """~80% of physical VMEM; fall back to the v7x 64 MiB floor if query fails."""
    try:
        cap = int(pltpu.get_tpu_info().vmem_capacity_bytes)
    except Exception:
        cap = 64 << 20
    return int(cap * 0.8)


def _est_vmem_bytes(bt, ct, Dp):
    """Conservative VMEM footprint estimate for one grid step (double-buffered)."""
    x_in = 2 * bt * Dp * 4              # f32 activation tile, 2 buffers
    w_in = 2 * (2 * Dp) * ct * 2        # bf16 fused weight tile, 2 buffers
    b_in = 2 * ct * 4                   # bias tile
    out_b = 2 * bt * ct * 4             # f32 output tile, 2 buffers
    scratch = bt * (2 * Dp) * 4 + bt * Dp * 4   # xcat copies + x^2 intermediate
    return x_in + w_in + b_in + out_b + scratch + (2 << 20)


def _gaussian_kernel(x_ref, w_ref, bias_ref, out_ref):
    # x_ref:    (bt, Dp)     f32 batch tile (zero-padded along D)
    # w_ref:    (2*Dp, ct)   bf16 fused weights: rows [0,Dp) = (mu*inv)^T,
    #                        rows [Dp,2Dp) = -0.5*inv^T   (zero-padded)
    # bias_ref: (1, ct)      f32  z_log - 0.5*sum_d mu^2*inv
    # out_ref:  (bt, ct)     f32  log-likelihood per (sample, class)
    x = x_ref[...]
    # x^2 computed in f32 on the VPU (v5e has no bf16 VPU), then down-cast for the MXU.
    xcat = jnp.concatenate(
        [x.astype(w_ref.dtype), (x * x).astype(w_ref.dtype)], axis=-1)  # (bt, 2*Dp)
    out_ref[...] = (
        jnp.dot(xcat, w_ref[...], preferred_element_type=jnp.float32) + bias_ref[...]
    ).astype(out_ref.dtype)


def prepare_gaussian_params(centers, covs, *, weight_dtype=jnp.bfloat16):
    """Build the batch-invariant, padded, fused weight slab once (cache & reuse)."""
    C, D = centers.shape
    assert covs.shape == (C, D)
    Dp = _round_up(D, 128)
    Cp = _round_up(C, 128)

    covs_f32 = covs.astype(jnp.float32)
    centers_f32 = centers.astype(jnp.float32)
    inv_cov = 1.0 / (covs_f32 + EPS)                                       # (C, D)
    z_log = -0.5 * jnp.sum(jnp.log(covs_f32 + EPS), axis=-1) - 0.5 * D * LOG_2PI
    q = jnp.sum(centers_f32 * centers_f32 * inv_cov, axis=-1)              # (C,)
    bias = z_log - 0.5 * q                                                 # (C,)

    pad = ((0, Dp - D), (0, Cp - C))
    w_cross = jnp.pad((centers_f32 * inv_cov).T, pad)    # multiplies x
    w_quad = jnp.pad((-0.5) * inv_cov.T, pad)            # multiplies x^2
    # Fused (2*Dp, Cp) slab; padded rows/cols are zero so padded D lanes and padded
    # classes contribute nothing (padded outputs are sliced off in the wrapper).
    w = jnp.concatenate([w_cross, w_quad], axis=0).astype(weight_dtype)
    bias_p = jnp.pad(bias, (0, Cp - C)).reshape(1, Cp).astype(jnp.float32)

    return {"w": w, "bias": bias_p, "D": D, "C": C, "Dp": Dp, "Cp": Cp}


def gaussian_layer_forward(x, params, *, batch_tile=None, class_tile=None):
    """Pallas forward for GaussianLayer.  x: (B, D) -> (B, C)."""
    B, D = x.shape
    assert D == params["D"]
    C, Dp, Cp = params["C"], params["Dp"], params["Cp"]
    w, bias_p = params["w"], params["bias"]

    # ---- batch tile: MXU-aligned (multiple of 256) when large, padded-8 when small.
    if batch_tile is None:
        batch_tile = 512
    bt = min(batch_tile, _round_up(B, 8))
    bt = _round_up(bt, 256) if bt >= 256 else _round_up(bt, 8)

    budget = _vmem_budget_bytes()

    # ---- class tile: prefer the whole padded class dim resident in VMEM.
    if class_tile is not None:
        ct = class_tile
        assert ct % 128 == 0 and Cp % ct == 0
    else:
        cands = sorted(
            {Cp} | {c for c in (2048, 1024, 512, 256, 128) if c <= Cp and Cp % c == 0},
            reverse=True)
        ct = None
        for cand in cands:
            if _est_vmem_bytes(bt, cand, Dp) <= budget:
                ct = cand
                break
        if ct is None:
            ct = 128
            while bt > 8 and _est_vmem_bytes(bt, ct, Dp) > budget:
                bt = max(8, _round_up(bt // 2, 8))
            # TODO(synk): for very large D (Dp >= 8192) on v7x, a K-split grid axis with
            # an f32 VMEM accumulator would beat shrinking the batch tile.

    Bp = _round_up(B, bt)

    # Single pad (no zeros-then-scatter materialization of the activation).
    x_p = jnp.pad(x.astype(jnp.float32), ((0, Bp - B), (0, Dp - D)))

    # Class tiles OUTER, batch tiles INNER -> weight index depends only on the outer
    # axis, so the weight tile stays resident across the whole batch sweep.
    grid = (Cp // ct, Bp // bt)

    out_p = pl.pallas_call(
        _gaussian_kernel,
        out_shape=jax.ShapeDtypeStruct((Bp, Cp), jnp.float32),
        grid_spec=pltpu.PrefetchScalarGridSpec(
            num_scalar_prefetch=0,
            grid=grid,
            in_specs=[
                pl.BlockSpec((bt, Dp), lambda j, i: (i, 0)),       # x batch tile
                pl.BlockSpec((2 * Dp, ct), lambda j, i: (0, j)),   # fused weights (resident over i)
                pl.BlockSpec((1, ct), lambda j, i: (0, j)),        # bias
            ],
            out_specs=pl.BlockSpec((bt, ct), lambda j, i: (i, j)),
        ),
        compiler_params=pltpu.CompilerParams(
            dimension_semantics=("parallel", "parallel"),
            vmem_limit_bytes=budget,
        ),
    )(x_p, w, bias_p)

    return out_p[:B, :C]


def gaussian_layer_reference(x, centers, covs):
    """Pure-JAX reference matching the PyTorch forward."""
    inv_cov = 1.0 / (covs + EPS)
    z_log = -0.5 * jnp.sum(jnp.log(covs + EPS), axis=-1) - 0.5 * x.shape[-1] * LOG_2PI
    diff = x[:, None, :] - centers[None, :, :]
    exp_log = -0.5 * jnp.sum(diff * inv_cov[None, :, :] * diff, axis=-1)
    return z_log[None, :] + exp_log


if __name__ == "__main__":
    # Small synthetic shapes consistent with the module's forward.
    batch = 8
    input_dim = 32
    n_classes = 8

    key = jax.random.PRNGKey(0)
    k_x, k_c, k_v = jax.random.split(key, 3)

    # Deterministic parameter init mirroring __init__:
    #   centers = 0.5 * randn(n_classes, input_dim)
    #   covs    = 0.2 + Exponential(scale=0.3, size=(n_classes, input_dim))
    centers = 0.5 * jax.random.normal(k_c, (n_classes, input_dim), dtype=jnp.float32)
    covs = 0.2 + 0.3 * jax.random.exponential(k_v, (n_classes, input_dim), dtype=jnp.float32)

    x = jax.random.normal(k_x, (batch, input_dim), dtype=jnp.float32)

    # Batch-invariant class constants prepared (and cacheable) once.
    params = prepare_gaussian_params(centers, covs)

    out = gaussian_layer_forward(x, params)
    out = jax.block_until_ready(out)

    ref = gaussian_layer_reference(x, centers, covs)
    # bf16 MXU inputs (f32 accumulation): the expanded-quadratic form with bf16
    # operands is not bit-identical to the direct (x-mu)^2 reduction, hence the
    # relaxed tolerance; errors observed are well inside this bound.
    np.testing.assert_allclose(np.asarray(out), np.asarray(ref), rtol=3e-2, atol=0.3)

    print("KERNEL_OK")
</pallas_src>

<mosaic_0001>
module attributes {stable_mosaic.version = 11 : i64} {
  func.func @_gaussian_kernel(%arg0: i32, %arg1: i32, %arg2: memref<8x128xf32, #tpu.memory_space<vmem>>, %arg3: memref<256x128xbf16, #tpu.memory_space<vmem>>, %arg4: memref<1x128xf32, #tpu.memory_space<vmem>>, %arg5: memref<8x128xf32, #tpu.memory_space<vmem>>) attributes {dimension_semantics = [#tpu.dimension_semantics<parallel>, #tpu.dimension_semantics<parallel>], iteration_bounds = array<i64: 1, 1>, scalar_prefetch = 0 : i64, scratch_operands = 0 : i64, tpu.core_type = #tpu.core_type<tc>, window_params = [{transform_indices = @transform_0, window_bounds = array<i64: 8, 128>}, {transform_indices = @transform_1, window_bounds = array<i64: 256, 128>}, {transform_indices = @transform_2, window_bounds = array<i64: 1, 128>}, {transform_indices = @transform_3, window_bounds = array<i64: 8, 128>}]} {
    %c0 = arith.constant 0 : index
    %c0_0 = arith.constant 0 : index
    %0 = vector.load %arg2[%c0, %c0_0] : memref<8x128xf32, #tpu.memory_space<vmem>>, vector<8x128xf32>
    %1 = arith.truncf %0 : vector<8x128xf32> to vector<8x128xbf16>
    %2 = arith.mulf %0, %0 : vector<8x128xf32>
    %3 = arith.truncf %2 : vector<8x128xf32> to vector<8x128xbf16>
    %4 = tpu.concatenate %1, %3 in 1 : vector<8x128xbf16>, vector<8x128xbf16> -> vector<8x256xbf16>
    %c0_1 = arith.constant 0 : index
    %c0_2 = arith.constant 0 : index
    %5 = vector.load %arg3[%c0_1, %c0_2] : memref<256x128xbf16, #tpu.memory_space<vmem>>, vector<256x128xbf16>
    %cst = arith.constant dense<0.000000e+00> : vector<8x128xf32>
    %6 = tpu.matmul %4, %5, %cst {dimension_numbers = #tpu.dot_dimension_numbers<[1], [0], [0], [1], [0, 0, 1, 1], [], []>} : vector<8x256xbf16>, vector<256x128xbf16>, vector<8x128xf32> -> vector<8x128xf32>
    %c0_3 = arith.constant 0 : index
    %c0_4 = arith.constant 0 : index
    %7 = vector.load %arg4[%c0_3, %c0_4] : memref<1x128xf32, #tpu.memory_space<vmem>>, vector<1x128xf32>
    %8 = vector.broadcast %7 : vector<1x128xf32> to vector<8x128xf32>
    %9 = arith.addf %6, %8 : vector<8x128xf32>
    %c0_5 = arith.constant 0 : index
    %c0_6 = arith.constant 0 : index
    %10 = vector.load %arg5[%c0_5, %c0_6] : memref<8x128xf32, #tpu.memory_space<vmem>>, vector<8x128xf32>
    tpu.vector_store %arg5[%c0_5, %c0_6], %9 {strides = array<i32>} : memref<8x128xf32, #tpu.memory_space<vmem>>, vector<8x128xf32>,
    return
  }
  func.func @transform_0(%arg0: i32, %arg1: i32) -> (i32, i32) {
    %c0_i32 = arith.constant 0 : i32
    %c0_i32_0 = arith.constant 0 : i32
    return %arg1, %c0_i32 : i32, i32
  }
  func.func @transform_1(%arg0: i32, %arg1: i32) -> (i32, i32) {
    %c0_i32 = arith.constant 0 : i32
    %c0_i32_0 = arith.constant 0 : i32
    return %c0_i32, %arg0 : i32, i32
  }
  func.func @transform_2(%arg0: i32, %arg1: i32) -> (i32, i32) {
    %c0_i32 = arith.constant 0 : i32
    %c0_i32_0 = arith.constant 0 : i32
    return %c0_i32, %arg0 : i32, i32
  }
  func.func @transform_3(%arg0: i32, %arg1: i32) -> (i32, i32) {
    %c0_i32 = arith.constant 0 : i32
    return %arg1, %arg0 : i32, i32
  }
}

</mosaic_0001>

<llo_original>
// kernel: tpu_custom_call.1
$region0: #{tpu_custom_call.1}
  #allocation0 [shape = 'u32[]', space=smem, size = 0x4, offset = 0x4, fixed_abs, tag = 'smem constant byte address 0x4 - core index']
  #allocation1 [shape = 'u32[144,128]{1,0:T(1,128)}', space=vmem, size = 0x12000, scoped, tag = 'internal scratch']
  %s0 = inlined_call_operand.hbm [shape: f32[8,128], index: 0, kind: input, shape index: {}]
  %s1 = inlined_call_operand.hbm [shape: bf16[256,128], index: 1, kind: input, shape index: {}]
  %s2 = inlined_call_operand.vmem [shape: f32[1,128], index: 2, kind: input, shape index: {}]
  %s3 = inlined_call_operand.hbm [shape: f32[8,128], index: 3, kind: output, shape index: {}]
  %s4 = sld [smem:[#allocation0]]
  $region30: #{tpu_custom_call.1} parent=0
    _
  %s6 = ssub.s32 1, %s4
  %s7 = scalar_select 0, %s6, %s4
  $region1: #{tpu_custom_call.1} parent=0
    #allocation2 [shape = 'u8[4096]{0}', space=vmem, size = 0x1000, scoped, tag = 'input window, operand 0, single buffered']
    #allocation3 [shape = 's32[1]{0}', space=sflag, size = 0x4, scoped, tag = 'scoped memory for tpu_custom_call.1']
    #allocation4 [shape = 's32[1]{0}', space=sflag, size = 0x4, scoped, tag = 'scoped memory for tpu_custom_call.1']
    #allocation5 [shape = 'u8[65536]{0}', space=vmem, size = 0x10000, scoped, tag = 'input window, operand 1, single buffered']
    #allocation6 [shape = 's32[1]{0}', space=sflag, size = 0x4, scoped, tag = 'scoped memory for tpu_custom_call.1']
    #allocation7 [shape = 'u8[4096]{0}', space=vmem, size = 0x1000, scoped, tag = 'output window, operand 0, single buffered']
    %8 = vsyncpa [#allocation3], 0
    %9 = vsyncpa [#allocation6], 0
    %10 = vsyncpa [#allocation4], 0
    // Predicated region
    $region2: #{tpu_custom_call.1} parent=1 // pred_check
      _
    $region3: #{tpu_custom_call.1} parent=1 // pred_check_branch
      %12 = sbr.rel (0) target = $region5
    $region4: #{tpu_custom_call.1} parent=1 // pred_region
      %s14 = ssub.s32 128, 128
      %15 = vsyncadd [#allocation3], %s14
      %s17 = sshll.u32 [#allocation2], 4
      %s18 = int_to_ptr.vmem [resolvable:$true] %s17
      %20 = dma.hbm_to_vmem [thread:$0]  %s0, 128, %s18, [#allocation3]
    $region5: #{tpu_custom_call.1} parent=1 // pred_fallthru
      _
    // Predicated region
    $region6: #{tpu_custom_call.1} parent=1 // pred_check
      _
    $region7: #{tpu_custom_call.1} parent=1 // pred_check_branch
      %22 = sbr.rel (0) target = $region9
    $region8: #{tpu_custom_call.1} parent=1 // pred_region
      %s24 = ssub.s32 2048, 2048
      %25 = vsyncadd [#allocation6], %s24
      %s26 = sshll.u32 [#allocation5], 4
      %s27 = int_to_ptr.vmem [resolvable:$true] %s26
      %32 = dma.hbm_to_vmem [thread:$0]  %s1, 2048, %s27, [#allocation6], 64, 64, 4
    $region9: #{tpu_custom_call.1} parent=1 // pred_fallthru
      _
    // Predicated region
    $region10: #{tpu_custom_call.1} parent=1 // pred_check
      _
    $region11: #{tpu_custom_call.1} parent=1 // pred_check_branch
      %34 = sbr.rel (0) target = $region13
    $region12: #{tpu_custom_call.1} parent=1 // pred_region
      _
    $region13: #{tpu_custom_call.1} parent=1 // pred_fallthru
      _
    // Predicated region
    $region14: #{tpu_custom_call.1} parent=1 // pred_check
      _
    $region15: #{tpu_custom_call.1} parent=1 // pred_check_branch
      %36 = sbr.rel (0) target = $region17
    $region16: #{tpu_custom_call.1} parent=1 // pred_region
      %37 = dma.done [#allocation3], 128
    $region17: #{tpu_custom_call.1} parent=1 // pred_fallthru
      _
    // Predicated region
    $region18: #{tpu_custom_call.1} parent=1 // pred_check
      _
    $region19: #{tpu_custom_call.1} parent=1 // pred_check_branch
      %39 = sbr.rel (0) target = $region21
    $region20: #{tpu_custom_call.1} parent=1 // pred_region
      %40 = dma.done [#allocation6], 2048
    $region21: #{tpu_custom_call.1} parent=1 // pred_fallthru
      _
    %v42 = vld [vmem:[#allocation2] sm:$0xff]
    %v43 = vpack.c.bf16 %v42, %v42
    %v44 = vmul.f32 %v42, %v42
    %v45 = vpack.c.bf16 %v44, %v44
    %v46 = vld [vmem:[#allocation5] sm:$0xf]
    %v47 = vld [vmem:[#allocation5 + $0x4] sm:$0xf]
    %v48 = vld [vmem:[#allocation5 + $0x8] sm:$0xf]
    %v49 = vld [vmem:[#allocation5 + $0xc] sm:$0xf]
    %v50 = vld [vmem:[#allocation5 + $0x10] sm:$0xf]
    %v51 = vld [vmem:[#allocation5 + $0x14] sm:$0xf]
    %v52 = vld [vmem:[#allocation5 + $0x18] sm:$0xf]
    %v53 = vld [vmem:[#allocation5 + $0x1c] sm:$0xf]
    %v54 = vld [vmem:[#allocation5 + $0x20] sm:$0xf]
    %v55 = vld [vmem:[#allocation5 + $0x24] sm:$0xf]
    %v56 = vld [vmem:[#allocation5 + $0x28] sm:$0xf]
    %v57 = vld [vmem:[#allocation5 + $0x2c] sm:$0xf]
    %v58 = vld [vmem:[#allocation5 + $0x30] sm:$0xf]
    %v59 = vld [vmem:[#allocation5 + $0x34] sm:$0xf]
    %v60 = vld [vmem:[#allocation5 + $0x38] sm:$0xf]
    %v61 = vld [vmem:[#allocation5 + $0x3c] sm:$0xf]
    %v62 = vld [vmem:[#allocation5 + $0x40] sm:$0xf]
    %v63 = vld [vmem:[#allocation5 + $0x44] sm:$0xf]
    %v64 = vld [vmem:[#allocation5 + $0x48] sm:$0xf]
    %v65 = vld [vmem:[#allocation5 + $0x4c] sm:$0xf]
    %v66 = vld [vmem:[#allocation5 + $0x50] sm:$0xf]
    %v67 = vld [vmem:[#allocation5 + $0x54] sm:$0xf]
    %v68 = vld [vmem:[#allocation5 + $0x58] sm:$0xf]
    %v69 = vld [vmem:[#allocation5 + $0x5c] sm:$0xf]
    %v70 = vld [vmem:[#allocation5 + $0x60] sm:$0xf]
    %v71 = vld [vmem:[#allocation5 + $0x64] sm:$0xf]
    %v72 = vld [vmem:[#allocation5 + $0x68] sm:$0xf]
    %v73 = vld [vmem:[#allocation5 + $0x6c] sm:$0xf]
    %v74 = vld [vmem:[#allocation5 + $0x70] sm:$0xf]
    %v75 = vld [vmem:[#allocation5 + $0x74] sm:$0xf]
    %v76 = vld [vmem:[#allocation5 + $0x78] sm:$0xf]
    %v77 = vld [vmem:[#allocation5 + $0x7c] sm:$0xf]
    %v78 = vld [vmem:[%s2] sm:$0x1]
    %v80 = vlaneseq
    %v81 = vshrl.u32 %v80, 7
    %v82 = vsub.s32 0, %v81
    %v83 = vrot.slane %v78, %v82
    %v117 = vunpack.c.l.b16 %v46
    %v118 = vunpack.c.l.b16 %v47
    %v119 = vunpack.c.l.b16 %v48
    %v120 = vunpack.c.l.b16 %v49
    %v121 = vunpack.c.l.b16 %v50
    %v122 = vunpack.c.l.b16 %v51
    %v123 = vunpack.c.l.b16 %v52
    %v124 = vunpack.c.l.b16 %v53
    %v125 = vunpack.c.l.b16 %v54
    %v126 = vunpack.c.l.b16 %v55
    %v127 = vunpack.c.l.b16 %v56
    %v128 = vunpack.c.l.b16 %v57
    %v129 = vunpack.c.l.b16 %v58
    %v130 = vunpack.c.l.b16 %v59
    %v131 = vunpack.c.l.b16 %v60
    %v132 = vunpack.c.l.b16 %v61
    %v133 = vunpack.c.l.b16 %v62
    %v134 = vunpack.c.l.b16 %v63
    %v135 = vunpack.c.l.b16 %v64
    %v136 = vunpack.c.l.b16 %v65
    %v137 = vunpack.c.l.b16 %v66
    %v138 = vunpack.c.l.b16 %v67
    %v139 = vunpack.c.l.b16 %v68
    %v140 = vunpack.c.l.b16 %v69
    %v141 = vunpack.c.l.b16 %v70
    %v142 = vunpack.c.l.b16 %v71
    %v143 = vunpack.c.l.b16 %v72
    %v144 = vunpack.c.l.b16 %v73
    %v145 = vunpack.c.l.b16 %v74
    %v146 = vunpack.c.l.b16 %v75
    %v147 = vunpack.c.l.b16 %v76
    %v148 = vunpack.c.l.b16 %v77
    %v149 = vpack.c.b16 %v118, %v117
    %v150 = vpack.c.b16 %v120, %v119
    %v151 = vpack.c.b16 %v122, %v121
    %v152 = vpack.c.b16 %v124, %v123
    %v153 = vpack.c.b16 %v126, %v125
    %v154 = vpack.c.b16 %v128, %v127
    %v155 = vpack.c.b16 %v130, %v129
    %v156 = vpack.c.b16 %v132, %v131
    %v157 = vpack.c.b16 %v134, %v133
    %v158 = vpack.c.b16 %v136, %v135
    %v159 = vpack.c.b16 %v138, %v137
    %v160 = vpack.c.b16 %v140, %v139
    %v161 = vpack.c.b16 %v142, %v141
    %v162 = vpack.c.b16 %v144, %v143
    %v163 = vpack.c.b16 %v146, %v145
    %v164 = vpack.c.b16 %v148, %v147
    %181 = vmatprep.subr.bf16.mxu0 0
    %182 = vmatpush1.bf16.msra.mxu0 %v149
    %183 = vmatprep.subr.bf16.mxu0 0
    %184 = vmatpush1.bf16.msra.mxu0 %v150
    %185 = vmatprep.subr.bf16.mxu0 0
    %186 = vmatpush1.bf16.msra.mxu0 %v151
    %187 = vmatprep.subr.bf16.mxu0 0
    %188 = vmatpush1.bf16.msra.mxu0 %v152
    %189 = vmatprep.subr.bf16.mxu0 0
    %190 = vmatpush1.bf16.msra.mxu0 %v153
    %191 = vmatprep.subr.bf16.mxu0 0
    %192 = vmatpush1.bf16.msra.mxu0 %v154
    %193 = vmatprep.subr.bf16.mxu0 0
    %194 = vmatpush1.bf16.msra.mxu0 %v155
    %195 = vmatprep.subr.bf16.mxu0 0
    %196 = vmatpush1.bf16.msra.mxu0 %v156
    %197 = vmatprep.subr.bf16.mxu0 0
    %198 = vmatpush1.bf16.msra.mxu0 %v157
    %199 = vmatprep.subr.bf16.mxu0 0
    %200 = vmatpush1.bf16.msra.mxu0 %v158
    %201 = vmatprep.subr.bf16.mxu0 0
    %202 = vmatpush1.bf16.msra.mxu0 %v159
    %203 = vmatprep.subr.bf16.mxu0 0
    %204 = vmatpush1.bf16.msra.mxu0 %v160
    %205 = vmatprep.subr.bf16.mxu0 0
    %206 = vmatpush1.bf16.msra.mxu0 %v161
    %207 = vmatprep.subr.bf16.mxu0 0
    %208 = vmatpush1.bf16.msra.mxu0 %v162
    %209 = vmatprep.subr.bf16.mxu0 0
    %210 = vmatpush1.bf16.msra.mxu0 %v163
    %211 = vmatprep.subr.bf16.mxu0 0
    %212 = vmatpush1.bf16.msra.mxu0 %v164
    %213 = vmatprep.mubr.bf16.mxu0 %v45
    %214 = vmatmul.mubr.bf16.gmra.mrb[0].mxu0 %v43
    %v215 = vpop.f32.mrb[0].mxu0
    %v216 = vadd.f32 %v83, %v215
    %v217 = vpop.f32.mrb[0].mxu0
    %v218 = vpop.f32.mrb[0].mxu0
    %v219 = vpop.f32.mrb[0].mxu0
    %220 = vdwg.mxu0
    %221 = vst [vmem:[#allocation7] sm:$0xff] %v216
    // Predicated region
    $region22: #{tpu_custom_call.1} parent=1 // pred_check
      _
    $region23: #{tpu_custom_call.1} parent=1 // pred_check_branch
      %223 = sbr.rel (0) target = $region25
    $region24: #{tpu_custom_call.1} parent=1 // pred_region
      %s225 = ssub.s32 128, 128
      %226 = vsyncadd [#allocation4], %s225
      %s228 = sshll.u32 [#allocation7], 4
      %s229 = int_to_ptr.vmem [resolvable:$true] %s228
      %231 = dma.vmem_to_hbm [thread:$0]  %s229, 128, %s3, [#allocation4]
    $region25: #{tpu_custom_call.1} parent=1 // pred_fallthru
      _
    // Predicated region
    $region26: #{tpu_custom_call.1} parent=1 // pred_check
      _
    $region27: #{tpu_custom_call.1} parent=1 // pred_check_branch
      %233 = sbr.rel (0) target = $region29
    $region28: #{tpu_custom_call.1} parent=1 // pred_region
      %234 = dma.done [#allocation4], 128
    $region29: #{tpu_custom_call.1} parent=1 // pred_fallthru
      _
    %235 = vsyncpa [#allocation3], 1
    %236 = vsyncpa [#allocation6], 1
    %237 = vsyncpa [#allocation4], 1

</llo_original>
